<compile_context>
chip_gen: v6e
topology: v6e:2x2x1
jax: 0.10.0
libtpu: 0.0.40
codegen_flags: <defaults>
</compile_context>

<pallas_src>
import functools
import math

import jax
import jax.numpy as jnp
from jax import lax
from jax.experimental import pallas as pl
from jax.experimental.pallas import tpu as pltpu

_LANES = 128


def _round_down(v, m):
    return max(m, (v // m) * m)


def _round_up(v, m):
    return ((v + m - 1) // m) * m


# ---------------------------------------------------------------------------
# Generation-aware configuration
# ---------------------------------------------------------------------------
@functools.lru_cache(maxsize=1)
def _chip_config():
    """Returns (target_tile_bytes, two_cores, vmem_limit_bytes)."""
    try:
        info = pltpu.get_tpu_info()
        vmem = int(getattr(info, "vmem_capacity_bytes", 128 << 20))
    except Exception:
        # Unknown runtime (e.g. interpret mode): conservative defaults.
        return (1 << 20), False, None
    if vmem <= (64 << 20):
        # v7x: 64 MiB VMEM/TC, 3.2 TB/s HBM, 2 TensorCores -> big tiles + core split.
        return (4 << 20), True, (40 << 20)
    # v5e / v6e: 128 MiB physical VMEM.  2 MiB tiles double-buffered in+out are
    # only 8 MiB; raising the scoped limit to 32 MiB gives scratch headroom and
    # is safe on both (well under physical VMEM).
    return (2 << 20), False, (32 << 20)


def _compiler_params(core_split, n_grid_axes, vmem_limit):
    core_par = getattr(pltpu, "CORE_PARALLEL", None)
    if core_split and core_par is not None:
        arb = getattr(pltpu, "ARBITRARY", "arbitrary")
        sems = (core_par,) + (arb,) * (n_grid_axes - 1)
    else:
        sems = ("parallel",) + ("arbitrary",) * (n_grid_axes - 1)
    return pltpu.CompilerParams(dimension_semantics=sems,
                                vmem_limit_bytes=vmem_limit)


def _launch(build, two_cores, *args):
    """Try the 2-TensorCore (CORE_PARALLEL) variant first on v7x; fall back to
    the single-core grid if that fails to lower, so the script always runs."""
    if two_cores:
        try:
            return build(True)(*args)
        except Exception:
            pass
    return build(False)(*args)


def _row_tile(nrows, row_bytes, mult, target_bytes, prefer_split):
    """Pick a row-tile size: as close to target_bytes as possible, a multiple of
    the sublane quantum, and (on 2-TC chips) small enough for >= 2 grid steps."""
    cap = max(1, target_bytes // max(1, row_bytes))
    cap = _round_down(cap, mult)
    if prefer_split and nrows > 2 * mult:
        cap = min(cap, _round_up(pl.cdiv(nrows, 2), mult))
    if nrows <= cap:
        return nrows  # single block == full dim (always a legal block shape)
    return cap


# ---------------------------------------------------------------------------
# Kernels
# ---------------------------------------------------------------------------
def _softmax_rowtile_kernel(x_ref, o_ref, *, temp):
    """Softmax over the last axis of one (rows_tile, d) block (d = full axis)."""
    x = x_ref[...].astype(jnp.float32)
    m = jnp.max(x, axis=-1, keepdims=True)
    e = jnp.exp((x - m) * temp)          # exp rides the EUP
    s = jnp.sum(e, axis=-1, keepdims=True)
    # approx=False: op is HBM-bound with VPU slack, exact reciprocal is free
    # and keeps bit-accuracy vs. the reference.
    o_ref[...] = (e * pl.reciprocal(s, approx=False)).astype(o_ref.dtype)


def _softmax_segmented_kernel(x_ref, o_ref, *, temp, d):
    """Lane-dense small-d path.  The block is (rows_tile, 128); every 128-lane
    row holds 128//d independent length-d softmax segments (a contiguous view
    of the original (rows, d) problem).  Loads/stores are unmasked, lane-dense.
      * per-segment max: log2(d) segment-cyclic roll-doubling steps (XLU).
      * per-segment sum: one matmul vs. a (128,128) block-diagonal ones matrix
        (MXU), which also broadcasts the sum back to every lane.
    """
    x = x_ref[...].astype(jnp.float32)
    rows, w = x.shape                      # w == 128 (static)
    pos = lax.broadcasted_iota(jnp.int32, (rows, w), 1) % d
    m = x
    k = 1
    while k < d:
        # Cyclic-within-segment shift by k: lanes with pos >= k take lane i-k,
        # lanes with pos < k wrap to lane i+(d-k) of the *same* segment.
        fwd = pltpu.roll(m, shift=k, axis=1)
        bwd = pltpu.roll(m, shift=(k - d) % w, axis=1)
        m = jnp.maximum(m, jnp.where(pos >= k, fwd, bwd))
        k *= 2
    e = jnp.exp((x - m) * temp)
    seg_i = lax.broadcasted_iota(jnp.int32, (w, w), 0) // d
    seg_j = lax.broadcasted_iota(jnp.int32, (w, w), 1) // d
    blockdiag = (seg_i == seg_j).astype(jnp.float32)
    s = jnp.dot(e, blockdiag, preferred_element_type=jnp.float32,
                precision=lax.Precision.HIGHEST)
    o_ref[...] = (e * pl.reciprocal(s, approx=False)).astype(o_ref.dtype)


def _stats_kernel(x_ref, m_ref, l_ref, m_sc, l_sc, *, temp, d, td):
    """Huge-d pass 1: online running max / rescaled exp-sum over d tiles."""
    j = pl.program_id(1)

    @pl.when(j == 0)
    def _():
        m_sc[...] = jnp.full_like(m_sc, -jnp.inf)
        l_sc[...] = jnp.zeros_like(l_sc)

    x = x_ref[...].astype(jnp.float32)
    col = lax.broadcasted_iota(jnp.int32, x.shape, 1) + j * td
    valid = col < d                        # mask the ragged last d block
    m_prev = m_sc[...]
    m_new = jnp.maximum(
        m_prev, jnp.max(jnp.where(valid, x, -jnp.inf), axis=-1, keepdims=True))
    p = jnp.where(valid, jnp.exp((x - m_new) * temp), 0.0)
    rescale = jnp.where(jnp.isfinite(m_prev),
                        jnp.exp((m_prev - m_new) * temp), 0.0)
    l_sc[...] = l_sc[...] * rescale + jnp.sum(p, axis=-1, keepdims=True)
    m_sc[...] = m_new

    @pl.when(j == pl.num_programs(1) - 1)
    def _():
        m_ref[...] = m_sc[...]
        l_ref[...] = l_sc[...]


def _normalize_kernel(x_ref, m_ref, l_ref, o_ref, *, temp):
    """Huge-d pass 2: elementwise exp((x - m) * temp) / l."""
    x = x_ref[...].astype(jnp.float32)
    e = jnp.exp((x - m_ref[...]) * temp)
    o_ref[...] = (e * pl.reciprocal(l_ref[...], approx=False)).astype(o_ref.dtype)


# ---------------------------------------------------------------------------
# pallas_call runners
# ---------------------------------------------------------------------------
def _run_rowtile(x2, temp, tile_rows, two_cores, vmem_limit, cost):
    rows, d = x2.shape
    grid = (pl.cdiv(rows, tile_rows),)
    kernel = functools.partial(_softmax_rowtile_kernel, temp=temp)

    def build(core_split):
        return pl.pallas_call(
            kernel,
            out_shape=jax.ShapeDtypeStruct((rows, d), x2.dtype),
            grid=grid,
            in_specs=[pl.BlockSpec((tile_rows, d), lambda i: (i, 0))],
            out_specs=pl.BlockSpec((tile_rows, d), lambda i: (i, 0)),
            compiler_params=_compiler_params(core_split, 1, vmem_limit),
            cost_estimate=cost,
        )

    return _launch(build, two_cores, x2)


def _run_segmented(xw, temp, d, tile_rows, two_cores, vmem_limit, cost):
    rows2, w = xw.shape
    grid = (pl.cdiv(rows2, tile_rows),)
    kernel = functools.partial(_softmax_segmented_kernel, temp=temp, d=d)

    def build(core_split):
        return pl.pallas_call(
            kernel,
            out_shape=jax.ShapeDtypeStruct((rows2, w), xw.dtype),
            grid=grid,
            in_specs=[pl.BlockSpec((tile_rows, w), lambda i: (i, 0))],
            out_specs=pl.BlockSpec((tile_rows, w), lambda i: (i, 0)),
            compiler_params=_compiler_params(core_split, 1, vmem_limit),
            cost_estimate=cost,
        )

    return _launch(build, two_cores, xw)


def _run_two_pass(x2, temp, tr, td, two_cores, vmem_limit):
    rows, d = x2.shape
    grid = (pl.cdiv(rows, tr), pl.cdiv(d, td))
    stats = functools.partial(_stats_kernel, temp=temp, d=d, td=td)
    norm = functools.partial(_normalize_kernel, temp=temp)

    def build_stats(core_split):
        return pl.pallas_call(
            stats,
            out_shape=(jax.ShapeDtypeStruct((rows, 1), jnp.float32),
                       jax.ShapeDtypeStruct((rows, 1), jnp.float32)),
            grid=grid,
            in_specs=[pl.BlockSpec((tr, td), lambda i, j: (i, j))],
            out_specs=(pl.BlockSpec((tr, 1), lambda i, j: (i, 0)),
                       pl.BlockSpec((tr, 1), lambda i, j: (i, 0))),
            scratch_shapes=[pltpu.VMEM((tr, 1), jnp.float32),
                            pltpu.VMEM((tr, 1), jnp.float32)],
            compiler_params=_compiler_params(core_split, 2, vmem_limit),
        )

    m, l = _launch(build_stats, two_cores, x2)

    def build_norm(core_split):
        return pl.pallas_call(
            norm,
            out_shape=jax.ShapeDtypeStruct((rows, d), x2.dtype),
            grid=grid,
            in_specs=[pl.BlockSpec((tr, td), lambda i, j: (i, j)),
                      pl.BlockSpec((tr, 1), lambda i, j: (i, 0)),
                      pl.BlockSpec((tr, 1), lambda i, j: (i, 0))],
            out_specs=pl.BlockSpec((tr, td), lambda i, j: (i, j)),
            compiler_params=_compiler_params(core_split, 2, vmem_limit),
        )

    return _launch(build_norm, two_cores, x2, m, l)


# ---------------------------------------------------------------------------
# One-time self-check of the lane-dense segmented kernel (roll direction, MXU
# precision).  If anything is off we silently keep the plain path (always
# correct); the fast path is only used when it is proven exact at 1e-5.
# ---------------------------------------------------------------------------
_SEGMENTED_OK = None


def _segmented_supported():
    global _SEGMENTED_OK
    if _SEGMENTED_OK is None:
        try:
            d = 16
            probe = (jnp.arange(4 * _LANES, dtype=jnp.float32)
                     .reshape(4, _LANES) % 23) * 0.17
            got = _run_segmented(probe, 1.0, d, 4, False, None, None)
            want = jax.nn.softmax(probe.reshape(4, _LANES // d, d),
                                  axis=-1).reshape(4, _LANES)
            _SEGMENTED_OK = bool(jnp.allclose(got, want, atol=1e-5, rtol=1e-5))
        except Exception:
            _SEGMENTED_OK = False
    return _SEGMENTED_OK


# ---------------------------------------------------------------------------
# Public wrapper
# ---------------------------------------------------------------------------
def st_softmax(x, temperature, *, target_tile_bytes=None, force_two_pass=False):
    """Forward of ST_SoftMax: exp((x - max(x, -1)) * temp) normalized over the
    last axis.  Mirrors the PyTorch module exactly (max of x is subtracted
    before the temperature scaling), so behaviour matches for any temperature;
    numerical stability is guaranteed for temperature > 0 as in the module."""
    temp = float(temperature)
    orig_shape = x.shape
    d = int(orig_shape[-1])
    rows = int(math.prod(orig_shape[:-1]))
    itemsize = jnp.dtype(x.dtype).itemsize
    sublane_mult = 8 * max(1, 4 // itemsize)   # 8 f32 / 16 bf16 / 32 int8

    tgt, two_cores, vmem_limit = _chip_config()
    if target_tile_bytes is not None:
        tgt = int(target_tile_bytes)

    cost = pl.CostEstimate(flops=6 * rows * d, transcendentals=rows * d,
                           bytes_accessed=2 * rows * d * itemsize)

    # --- Huge-d fallback: a single (sublane_mult, d) block would not fit the
    # VMEM budget -> D-tiled two-pass plan (online max / rescaled sum).
    if force_two_pass or (sublane_mult * d * itemsize > tgt and d > _LANES):
        x2 = x.reshape(rows, d)
        if d <= _LANES:
            td = d
        else:
            td = min(_round_down(d, _LANES),
                     max(_LANES,
                         _round_down(tgt // (sublane_mult * itemsize), _LANES)))
        tr = _row_tile(rows, td * itemsize, sublane_mult, tgt, two_cores)
        out2 = _run_two_pass(x2, temp, tr, td, two_cores, vmem_limit)
        return out2.reshape(orig_shape)

    # --- Lane-dense small-d path: view (rows, d) as (rows*d/128, 128) so every
    # load/store is a full unmasked 128-lane vector.  No wrapper transposes,
    # no padding copies.  Requires d | 128 and rows % (128//d) == 0.
    if d < _LANES and _LANES % d == 0:
        f = _LANES // d
        if rows % f == 0 and rows >= f and _segmented_supported():
            rows2 = rows // f
            xw = x.reshape(rows2, _LANES)      # contiguous view of the same data
            tile2 = _row_tile(rows2, _LANES * itemsize, sublane_mult, tgt,
                              two_cores)
            outw = _run_segmented(xw, temp, d, tile2, two_cores, vmem_limit,
                                  cost)
            return outw.reshape(orig_shape)

    # --- Plain row-tiled path (d >= 128, or a small d that does not fit the
    # segmented layout).  Ragged last block: Pallas masks the OOB writes, so
    # no jnp.pad / [:rows] HBM round-trips.
    # NOTE(v7x): if re-profiling shows the per-row max/sum saturating the XLU
    # here, the row-sum can be moved to the MXU (ones-vector matmul).
    x2 = x.reshape(rows, d)
    tile = _row_tile(rows, d * itemsize, sublane_mult, tgt, two_cores)
    out2 = _run_rowtile(x2, temp, tile, two_cores, vmem_limit, cost)
    return out2.reshape(orig_shape)


# ---------------------------------------------------------------------------
# Reference & tests
# ---------------------------------------------------------------------------
def _reference(x, temperature):
    m = jnp.max(x, axis=-1, keepdims=True)
    e = jnp.exp((x - m) * temperature)
    return e / jnp.sum(e, axis=-1, keepdims=True)


if __name__ == "__main__":
    key = jax.random.PRNGKey(0)
    temperature = 2.5   # deterministic module "parameter" from __init__(temperature)

    # 1) Primary shape implied by the module (NCHW-like, softmax over last dim
    #    = 16): exercises the lane-dense segmented path.
    x = jax.random.normal(key, (2, 4, 16, 16), dtype=jnp.float32)
    out = jax.block_until_ready(st_softmax(x, temperature))
    ref = _reference(x, temperature)
    assert out.shape == x.shape
    assert jnp.allclose(out, ref, atol=1e-5, rtol=1e-5)
    assert jnp.allclose(jnp.sum(out, axis=-1), 1.0, atol=1e-5)

    keys = jax.random.split(key, 5)

    # 2) d >= 128 row-tiled path, single block.
    xa = jax.random.normal(keys[0], (2, 8, 256), dtype=jnp.float32)
    assert jnp.allclose(jax.block_until_ready(st_softmax(xa, temperature)),
                        _reference(xa, temperature), atol=1e-5, rtol=1e-5)

    # 3) Small d whose row count does not fit the segmented layout -> plain path.
    xb = jax.random.normal(keys[1], (3, 5, 16), dtype=jnp.float32)
    assert jnp.allclose(jax.block_until_ready(st_softmax(xb, temperature)),
                        _reference(xb, temperature), atol=1e-5, rtol=1e-5)

    # 4) Multi-step grid with a ragged last row block (plain path): verifies
    #    Pallas drops the out-of-bounds writes (no jnp.pad needed).
    xc = jax.random.normal(keys[2], (3, 70, 256), dtype=jnp.float32)
    assert jnp.allclose(
        jax.block_until_ready(st_softmax(xc, temperature,
                                         target_tile_bytes=64 * 1024)),
        _reference(xc, temperature), atol=1e-5, rtol=1e-5)

    # 5) Multi-step ragged grid on the lane-dense segmented path.
    xd = jax.random.normal(keys[3], (2, 100, 16), dtype=jnp.float32)
    assert jnp.allclose(
        jax.block_until_ready(st_softmax(xd, temperature,
                                         target_tile_bytes=4096)),
        _reference(xd, temperature), atol=1e-5, rtol=1e-5)

    # 6) Huge-d two-pass plan (forced small so it runs at test size): D-tiled
    #    online max/sum with a masked ragged last d block.
    xe = jax.random.normal(keys[4], (40, 16, 300), dtype=jnp.float32)
    assert jnp.allclose(
        jax.block_until_ready(st_softmax(xe, temperature,
                                         target_tile_bytes=64 * 1024,
                                         force_two_pass=True)),
        _reference(xe, temperature), atol=1e-5, rtol=1e-5)

    print("KERNEL_OK")
</pallas_src>

<mosaic_0001>
module attributes {stable_mosaic.version = 11 : i64} {
  func.func @_softmax_rowtile_kernel(%arg0: i32, %arg1: memref<128x16xf32, #tpu.memory_space<vmem>>, %arg2: memref<128x16xf32, #tpu.memory_space<vmem>>) attributes {dimension_semantics = [#tpu.dimension_semantics<parallel>], iteration_bounds = array<i64: 1>, scalar_prefetch = 0 : i64, scratch_operands = 0 : i64, tpu.core_type = #tpu.core_type<tc>, window_params = [{transform_indices = @transform_0, window_bounds = array<i64: 128, 16>}, {transform_indices = @transform_1, window_bounds = array<i64: 128, 16>}]} {
    %c0 = arith.constant 0 : index
    %c0_0 = arith.constant 0 : index
    %0 = vector.load %arg1[%c0, %c0_0] : memref<128x16xf32, #tpu.memory_space<vmem>>, vector<128x16xf32>
    %cst = arith.constant dense<0xFF800000> : vector<128xf32>
    %1 = vector.multi_reduction <maximumf>, %0, %cst [1] : vector<128x16xf32> to vector<128xf32>
    %2 = vector.shape_cast %1 : vector<128xf32> to vector<128x1xf32>
    %3 = vector.broadcast %2 : vector<128x1xf32> to vector<128x16xf32>
    %4 = arith.subf %0, %3 : vector<128x16xf32>
    %cst_1 = arith.constant 2.500000e+00 : f32
    %5 = vector.broadcast %cst_1 : f32 to vector<128x16xf32>
    %6 = arith.mulf %4, %5 : vector<128x16xf32>
    %7 = math.exp %6 : vector<128x16xf32>
    %cst_2 = arith.constant dense<0.000000e+00> : vector<128xf32>
    %8 = vector.multi_reduction <add>, %7, %cst_2 [1] : vector<128x16xf32> to vector<128xf32>
    %9 = vector.shape_cast %8 : vector<128xf32> to vector<128x1xf32>
    %10 = tpu.reciprocal %9 : vector<128x1xf32> -> vector<128x1xf32>
    %11 = vector.broadcast %10 : vector<128x1xf32> to vector<128x16xf32>
    %12 = arith.mulf %7, %11 : vector<128x16xf32>
    %c0_3 = arith.constant 0 : index
    %c0_4 = arith.constant 0 : index
    %13 = vector.load %arg2[%c0_3, %c0_4] : memref<128x16xf32, #tpu.memory_space<vmem>>, vector<128x16xf32>
    tpu.vector_store %arg2[%c0_3, %c0_4], %12 {strides = array<i32>} : memref<128x16xf32, #tpu.memory_space<vmem>>, vector<128x16xf32>,
    return
  }
  func.func @transform_0(%arg0: i32) -> (i32, i32) {
    %c0_i32 = arith.constant 0 : i32
    %c0_i32_0 = arith.constant 0 : i32
    return %arg0, %c0_i32 : i32, i32
  }
  func.func @transform_1(%arg0: i32) -> (i32, i32) {
    %c0_i32 = arith.constant 0 : i32
    %c0_i32_0 = arith.constant 0 : i32
    return %arg0, %c0_i32 : i32, i32
  }
}

</mosaic_0001>

<llo_original>
// kernel: tpu_custom_call.1
$region0: #{tpu_custom_call.1}
  #allocation0 [shape = 'u32[]', space=smem, size = 0x4, offset = 0x4, fixed_abs, tag = 'smem constant byte address 0x4 - core index']
  #allocation1 [shape = 'u32[144,128]{1,0:T(1,128)}', space=vmem, size = 0x12000, scoped, tag = 'internal scratch']
  %s0 = inlined_call_operand.vmem [shape: f32[128,16], index: 0, kind: input, shape index: {}]
  %s1 = inlined_call_operand.vmem [shape: f32[128,16], index: 1, kind: output, shape index: {}]
  %s2 = sld [smem:[#allocation0]]
  $region14: #{tpu_custom_call.1} parent=0
    _
  %s4 = ssub.s32 1, %s2
  %s5 = scalar_select 0, %s4, %s2
  // Predicated region
  $region2: #{tpu_custom_call.1} parent=0 // pred_check
    _
  $region3: #{tpu_custom_call.1} parent=0 // pred_check_branch
    %7 = sbr.rel (0) target = $region5
  $region4: #{tpu_custom_call.1} parent=0 // pred_region
    _
  $region5: #{tpu_custom_call.1} parent=0 // pred_fallthru
    _
  %v8 = vld [vmem:[%s0] sm:$0xff]
  %v9 = vld [vmem:[%s0 + $0x8] sm:$0xff]
  %v10 = vld [vmem:[%s0 + $0x10] sm:$0xff]
  %v11 = vld [vmem:[%s0 + $0x18] sm:$0xff]
  %v12 = vld [vmem:[%s0 + $0x20] sm:$0xff]
  %v13 = vld [vmem:[%s0 + $0x28] sm:$0xff]
  %v14 = vld [vmem:[%s0 + $0x30] sm:$0xff]
  %v15 = vld [vmem:[%s0 + $0x38] sm:$0xff]
  %v16 = vld [vmem:[%s0 + $0x40] sm:$0xff]
  %v17 = vld [vmem:[%s0 + $0x48] sm:$0xff]
  %v18 = vld [vmem:[%s0 + $0x50] sm:$0xff]
  %v19 = vld [vmem:[%s0 + $0x58] sm:$0xff]
  %v20 = vld [vmem:[%s0 + $0x60] sm:$0xff]
  %v21 = vld [vmem:[%s0 + $0x68] sm:$0xff]
  %v22 = vld [vmem:[%s0 + $0x70] sm:$0xff]
  %v23 = vld [vmem:[%s0 + $0x78] sm:$0xff]
  %vm24 = vcmask 130048
  %v25 = vsel %vm24, %v8, -inf
  %26 = vmax.xlane.f32.xlu0 %v25
  %v27 = vpop.xlane.xlu0 %26
  %v28 = vsel %vm24, %v9, -inf
  %29 = vmax.xlane.f32.xlu0 %v28
  %v30 = vpop.xlane.xlu0 %29
  %v31 = vsel %vm24, %v10, -inf
  %32 = vmax.xlane.f32.xlu0 %v31
  %v33 = vpop.xlane.xlu0 %32
  %v34 = vsel %vm24, %v11, -inf
  %35 = vmax.xlane.f32.xlu0 %v34
  %v36 = vpop.xlane.xlu0 %35
  %v37 = vsel %vm24, %v12, -inf
  %38 = vmax.xlane.f32.xlu0 %v37
  %v39 = vpop.xlane.xlu0 %38
  %v40 = vsel %vm24, %v13, -inf
  %41 = vmax.xlane.f32.xlu0 %v40
  %v42 = vpop.xlane.xlu0 %41
  %v43 = vsel %vm24, %v14, -inf
  %44 = vmax.xlane.f32.xlu0 %v43
  %v45 = vpop.xlane.xlu0 %44
  %v46 = vsel %vm24, %v15, -inf
  %47 = vmax.xlane.f32.xlu0 %v46
  %v48 = vpop.xlane.xlu0 %47
  %v49 = vsel %vm24, %v16, -inf
  %50 = vmax.xlane.f32.xlu0 %v49
  %v51 = vpop.xlane.xlu0 %50
  %v52 = vsel %vm24, %v17, -inf
  %53 = vmax.xlane.f32.xlu0 %v52
  %v54 = vpop.xlane.xlu0 %53
  %v55 = vsel %vm24, %v18, -inf
  %56 = vmax.xlane.f32.xlu0 %v55
  %v57 = vpop.xlane.xlu0 %56
  %v58 = vsel %vm24, %v19, -inf
  %59 = vmax.xlane.f32.xlu0 %v58
  %v60 = vpop.xlane.xlu0 %59
  %v61 = vsel %vm24, %v20, -inf
  %62 = vmax.xlane.f32.xlu0 %v61
  %v63 = vpop.xlane.xlu0 %62
  %v64 = vsel %vm24, %v21, -inf
  %65 = vmax.xlane.f32.xlu0 %v64
  %v66 = vpop.xlane.xlu0 %65
  %v67 = vsel %vm24, %v22, -inf
  %68 = vmax.xlane.f32.xlu0 %v67
  %v69 = vpop.xlane.xlu0 %68
  %v70 = vsel %vm24, %v23, -inf
  %71 = vmax.xlane.f32.xlu0 %v70
  %v72 = vpop.xlane.xlu0 %71
  %v73 = vsub.f32 %v8, %v27
  %v74 = vsub.f32 %v9, %v30
  %v75 = vsub.f32 %v10, %v33
  %v76 = vsub.f32 %v11, %v36
  %v77 = vsub.f32 %v12, %v39
  %v78 = vsub.f32 %v13, %v42
  %v79 = vsub.f32 %v14, %v45
  %v80 = vsub.f32 %v15, %v48
  %v81 = vsub.f32 %v16, %v51
  %v82 = vsub.f32 %v17, %v54
  %v83 = vsub.f32 %v18, %v57
  %v84 = vsub.f32 %v19, %v60
  %v85 = vsub.f32 %v20, %v63
  %v86 = vsub.f32 %v21, %v66
  %v87 = vsub.f32 %v22, %v69
  %v88 = vsub.f32 %v23, %v72
  %v89 = vmul.f32 %v73, 2.5
  %v90 = vmul.f32 %v74, 2.5
  %v91 = vmul.f32 %v75, 2.5
  %v92 = vmul.f32 %v76, 2.5
  %v93 = vmul.f32 %v77, 2.5
  %v94 = vmul.f32 %v78, 2.5
  %v95 = vmul.f32 %v79, 2.5
  %v96 = vmul.f32 %v80, 2.5
  %v97 = vmul.f32 %v81, 2.5
  %v98 = vmul.f32 %v82, 2.5
  %v99 = vmul.f32 %v83, 2.5
  %v100 = vmul.f32 %v84, 2.5
  %v101 = vmul.f32 %v85, 2.5
  %v102 = vmul.f32 %v86, 2.5
  %v103 = vmul.f32 %v87, 2.5
  %v104 = vmul.f32 %v88, 2.5
  %v105 = vmul.f32 %v89, 1.442695
  %v106 = vpow.pop %v105
  %v107 = vmul.f32 %v90, 1.442695
  %v108 = vpow.pop %v107
  %v109 = vmul.f32 %v91, 1.442695
  %v110 = vpow.pop %v109
  %v111 = vmul.f32 %v92, 1.442695
  %v112 = vpow.pop %v111
  %v113 = vmul.f32 %v93, 1.442695
  %v114 = vpow.pop %v113
  %v115 = vmul.f32 %v94, 1.442695
  %v116 = vpow.pop %v115
  %v117 = vmul.f32 %v95, 1.442695
  %v118 = vpow.pop %v117
  %v119 = vmul.f32 %v96, 1.442695
  %v120 = vpow.pop %v119
  %v121 = vmul.f32 %v97, 1.442695
  %v122 = vpow.pop %v121
  %v123 = vmul.f32 %v98, 1.442695
  %v124 = vpow.pop %v123
  %v125 = vmul.f32 %v99, 1.442695
  %v126 = vpow.pop %v125
  %v127 = vmul.f32 %v100, 1.442695
  %v128 = vpow.pop %v127
  %v129 = vmul.f32 %v101, 1.442695
  %v130 = vpow.pop %v129
  %v131 = vmul.f32 %v102, 1.442695
  %v132 = vpow.pop %v131
  %v133 = vmul.f32 %v103, 1.442695
  %v134 = vpow.pop %v133
  %v135 = vmul.f32 %v104, 1.442695
  %v136 = vpow.pop %v135
  %v137 = vsel %vm24, %v106, 0.0
  %138 = vadd.xlane.f32.xlu0 %v137
  %v139 = vpop.xlane.xlu0 %138
  %v140 = vsel %vm24, %v108, 0.0
  %141 = vadd.xlane.f32.xlu0 %v140
  %v142 = vpop.xlane.xlu0 %141
  %v143 = vsel %vm24, %v110, 0.0
  %144 = vadd.xlane.f32.xlu0 %v143
  %v145 = vpop.xlane.xlu0 %144
  %v146 = vsel %vm24, %v112, 0.0
  %147 = vadd.xlane.f32.xlu0 %v146
  %v148 = vpop.xlane.xlu0 %147
  %v149 = vsel %vm24, %v114, 0.0
  %150 = vadd.xlane.f32.xlu0 %v149
  %v151 = vpop.xlane.xlu0 %150
  %v152 = vsel %vm24, %v116, 0.0
  %153 = vadd.xlane.f32.xlu0 %v152
  %v154 = vpop.xlane.xlu0 %153
  %v155 = vsel %vm24, %v118, 0.0
  %156 = vadd.xlane.f32.xlu0 %v155
  %v157 = vpop.xlane.xlu0 %156
  %v158 = vsel %vm24, %v120, 0.0
  %159 = vadd.xlane.f32.xlu0 %v158
  %v160 = vpop.xlane.xlu0 %159
  %v161 = vsel %vm24, %v122, 0.0
  %162 = vadd.xlane.f32.xlu0 %v161
  %v163 = vpop.xlane.xlu0 %162
  %v164 = vsel %vm24, %v124, 0.0
  %165 = vadd.xlane.f32.xlu0 %v164
  %v166 = vpop.xlane.xlu0 %165
  %v167 = vsel %vm24, %v126, 0.0
  %168 = vadd.xlane.f32.xlu0 %v167
  %v169 = vpop.xlane.xlu0 %168
  %v170 = vsel %vm24, %v128, 0.0
  %171 = vadd.xlane.f32.xlu0 %v170
  %v172 = vpop.xlane.xlu0 %171
  %v173 = vsel %vm24, %v130, 0.0
  %174 = vadd.xlane.f32.xlu0 %v173
  %v175 = vpop.xlane.xlu0 %174
  %v176 = vsel %vm24, %v132, 0.0
  %177 = vadd.xlane.f32.xlu0 %v176
  %v178 = vpop.xlane.xlu0 %177
  %v179 = vsel %vm24, %v134, 0.0
  %180 = vadd.xlane.f32.xlu0 %v179
  %v181 = vpop.xlane.xlu0 %180
  %v182 = vsel %vm24, %v136, 0.0
  %183 = vadd.xlane.f32.xlu0 %v182
  %v184 = vpop.xlane.xlu0 %183
  %v185 = vrcp.pop %v139
  %v186 = vrcp.pop %v142
  %v187 = vrcp.pop %v145
  %v188 = vrcp.pop %v148
  %v189 = vrcp.pop %v151
  %v190 = vrcp.pop %v154
  %v191 = vrcp.pop %v157
  %v192 = vrcp.pop %v160
  %v193 = vrcp.pop %v163
  %v194 = vrcp.pop %v166
  %v195 = vrcp.pop %v169
  %v196 = vrcp.pop %v172
  %v197 = vrcp.pop %v175
  %v198 = vrcp.pop %v178
  %v199 = vrcp.pop %v181
  %v200 = vrcp.pop %v184
  %v201 = vmul.f32 %v106, %v185
  %v202 = vmul.f32 %v108, %v186
  %v203 = vmul.f32 %v110, %v187
  %v204 = vmul.f32 %v112, %v188
  %v205 = vmul.f32 %v114, %v189
  %v206 = vmul.f32 %v116, %v190
  %v207 = vmul.f32 %v118, %v191
  %v208 = vmul.f32 %v120, %v192
  %v209 = vmul.f32 %v122, %v193
  %v210 = vmul.f32 %v124, %v194
  %v211 = vmul.f32 %v126, %v195
  %v212 = vmul.f32 %v128, %v196
  %v213 = vmul.f32 %v130, %v197
  %v214 = vmul.f32 %v132, %v198
  %v215 = vmul.f32 %v134, %v199
  %v216 = vmul.f32 %v136, %v200
  %217 = vst.msk [vmem:[%s1] sm:$0xff] %vm24, %v201
  %218 = vst.msk [vmem:[%s1 + $0x8] sm:$0xff] %vm24, %v202
  %219 = vst.msk [vmem:[%s1 + $0x10] sm:$0xff] %vm24, %v203
  %220 = vst.msk [vmem:[%s1 + $0x18] sm:$0xff] %vm24, %v204
  %221 = vst.msk [vmem:[%s1 + $0x20] sm:$0xff] %vm24, %v205
  %222 = vst.msk [vmem:[%s1 + $0x28] sm:$0xff] %vm24, %v206
  %223 = vst.msk [vmem:[%s1 + $0x30] sm:$0xff] %vm24, %v207
  %224 = vst.msk [vmem:[%s1 + $0x38] sm:$0xff] %vm24, %v208
  %225 = vst.msk [vmem:[%s1 + $0x40] sm:$0xff] %vm24, %v209
  %226 = vst.msk [vmem:[%s1 + $0x48] sm:$0xff] %vm24, %v210
  %227 = vst.msk [vmem:[%s1 + $0x50] sm:$0xff] %vm24, %v211
  %228 = vst.msk [vmem:[%s1 + $0x58] sm:$0xff] %vm24, %v212
  %229 = vst.msk [vmem:[%s1 + $0x60] sm:$0xff] %vm24, %v213
  %230 = vst.msk [vmem:[%s1 + $0x68] sm:$0xff] %vm24, %v214
  %231 = vst.msk [vmem:[%s1 + $0x70] sm:$0xff] %vm24, %v215
  %232 = vst.msk [vmem:[%s1 + $0x78] sm:$0xff] %vm24, %v216
  // Predicated region
  $region6: #{tpu_custom_call.1} parent=0 // pred_check
    _
  $region7: #{tpu_custom_call.1} parent=0 // pred_check_branch
    %234 = sbr.rel (0) target = $region9
  $region8: #{tpu_custom_call.1} parent=0 // pred_region
    _
  $region9: #{tpu_custom_call.1} parent=0 // pred_fallthru
    _
  // Predicated region
  $region10: #{tpu_custom_call.1} parent=0 // pred_check
    _
  $region11: #{tpu_custom_call.1} parent=0 // pred_check_branch
    %236 = sbr.rel (0) target = $region13
  $region12: #{tpu_custom_call.1} parent=0 // pred_region
    _
  $region13: #{tpu_custom_call.1} parent=0 // pred_fallthru
    _

</llo_original>
